<compile_context>
chip_gen: v5e
topology: v5e:2x2
jax: 0.10.0
libtpu: 0.0.40
codegen_flags: <defaults>
</compile_context>

<pallas_src>
import functools

import jax
import jax.numpy as jnp
from jax.experimental import pallas as pl
from jax.experimental.pallas import tpu as pltpu

# Conservative per-step VMEM budget (fits v7x's 32 MiB scoped default with headroom;
# v5e/v6e have 128 MiB physical, so this is never the limiter there at these sizes).
_VMEM_BUDGET_BYTES = 24 * 1024 * 1024
_DEFAULT_BLOCK_B = 32


def cnn_kernel(emb_ref, wstk_ref, negmask_ref, bcat_ref, wl_ref, bl_ref, out_ref):
    """One batch tile per grid step: conv(1..4) + max-over-time + bias + ReLU + linear."""
    TB, S, E = emb_ref.shape
    F4 = wstk_ref.shape[-1]
    TBS = TB * S

    # bf16 activations/weights on the MXU, f32 accumulation.  Batch is folded into the
    # matmul M dimension; the 4 time-offset tap groups are 4 small matmuls accumulated
    # into ONE live (TBS, 4F) f32 slab (instead of a single (TBS, 16F) matmul), keeping
    # VMEM/vreg pressure 4x lower and avoiding unaligned lane slices of the product.
    emb2d = emb_ref[...].reshape(TBS, E)
    conv = jnp.dot(emb2d, wstk_ref[0], preferred_element_type=jnp.float32)   # dt=0 taps
    for g in range(1, 4):
        p_g = jnp.dot(emb2d, wstk_ref[g], preferred_element_type=jnp.float32)
        # Taps at time offset dt=g contribute g steps earlier: sublane roll (XLU slot).
        conv = conv + pltpu.roll(p_g, TBS - g, 0)

    # Precomputed additive tail mask: 0 where conv position t is valid for that feature
    # column's kernel size, -1e30 otherwise, so invalid / roll-wrapped rows never win
    # the max-pool even though the raw conv values can be negative.
    masked = conv.reshape(TB, S, F4) + negmask_ref[...]
    pooled = jnp.max(masked, axis=1)                                         # (TB, 4F)

    # x -> relu(x + b) is monotone, so max_t relu(conv_t + b) == relu(max_t conv_t + b);
    # bias + ReLU therefore run on the small pooled tile instead of the full slab.
    # NOTE: this (and the -1e30 mask) is coupled to max-pool + ReLU semantics; revisit if
    # the activation or pooling ever changes (e.g. mean-pool / leaky-ReLU).
    feats = jnp.maximum(pooled + bcat_ref[...], 0.0)

    # Final linear; output store is lane-dense (last dim padded to 128).
    out_ref[0] = jnp.dot(feats.astype(wl_ref.dtype), wl_ref[...],
                         preferred_element_type=jnp.float32) + bl_ref[...]


def prepare_params(params):
    """One-time weight packing (hoisted out of the per-call path)."""
    E = params["embedding"].shape[1]
    F = params["w1"].shape[-1]
    out_dim = params["wl"].shape[-1]
    F4 = 4 * F
    out_pad = max(128, pl.cdiv(out_dim, 128) * 128)

    # Tap-offset group dt holds kernel k's tap w_k[dt] in lanes [(k-1)F : kF]; zero where
    # kernel k has no tap at offset dt (dt >= k).
    w_stack = jnp.zeros((4, E, F4), jnp.float32)
    for k in (1, 2, 3, 4):
        w = params[f"w{k}"]                                     # (k, E, F)
        for dt in range(k):
            w_stack = w_stack.at[dt, :, (k - 1) * F:k * F].set(w[dt])

    b_cat = jnp.concatenate([params[f"b{k}"] for k in (1, 2, 3, 4)], axis=1)   # (1, 4F)
    wl_pad = jnp.zeros((F4, out_pad), jnp.float32).at[:, :out_dim].set(params["wl"])
    bl_pad = jnp.zeros((1, out_pad), jnp.float32).at[:, :out_dim].set(params["bl"])

    return {
        "emb_table": params["embedding"].astype(jnp.bfloat16),   # bf16 halves gather traffic
        "w_stack": w_stack.astype(jnp.bfloat16),
        "b_cat": b_cat.astype(jnp.float32),
        "wl_pad": wl_pad.astype(jnp.bfloat16),
        "bl_pad": bl_pad.astype(jnp.float32),
    }


def _derive_batch_tiling(B, S, E, F4, block_b):
    """Pick batch tile TB and grid-step count G.

    TB grows until TB*S >= 512 rows (amortizes ~0.35us/step overhead, fills the MXU M dim),
    capped by a conservative VMEM budget (double-buffered bf16 emb tile + f32 conv slab +
    double-buffered f32 output) and by B.  G is kept >= 2 (and even when > 2) so v7x's two
    TensorCores get balanced work under dimension_semantics=("parallel",).
    """
    tb = max(block_b, pl.cdiv(512, S))
    per_row = 2 * S * E * 2 + S * F4 * 4 + 2 * 128 * 4
    tb = min(tb, max(1, _VMEM_BUDGET_BYTES // per_row))
    tb = max(1, min(tb, B))
    g = pl.cdiv(B, tb)
    if B >= 2 and g < 2:
        g = 2
        tb = pl.cdiv(B, g)
    if g > 2 and g % 2 == 1:
        g += 1
    return tb, g


@functools.partial(jax.jit, static_argnames=("out_dim", "block_b"))
def cnn_forward(text, packed, *, out_dim, block_b=_DEFAULT_BLOCK_B):
    """Fused TextCNN forward on pre-packed params. Embedding gather stays in JAX glue."""
    # TODO(synk): fuse the embedding gather into the kernel (scalar-prefetched token ids +
    # resident bf16 table on v5e/v6e, per-row DMA gather with double buffering on v7x) to
    # remove the activations' HBM round trip.
    embedded = jnp.take(packed["emb_table"], text, axis=0)        # (B, S, E) bf16
    B, S, E = embedded.shape
    F4 = packed["b_cat"].shape[1]
    out_pad = packed["bl_pad"].shape[1]

    TB, G = _derive_batch_tiling(B, S, E, F4, block_b)
    Bp = G * TB
    if Bp != B:
        embedded = jnp.pad(embedded, ((0, Bp - B), (0, 0), (0, 0)))

    # Additive tail-validity mask (cheap, traced once per shape under jit): conv position
    # t is valid for kernel size k (feature column c, k = c // F + 1) iff t <= S - k.
    # If S < 4 the kernel-4 (and 3) columns become all-invalid and pool to relu(-1e30+b)=0
    # instead of erroring like PyTorch's Conv2d would.
    F = F4 // 4
    t = jnp.arange(S, dtype=jnp.int32)[:, None]
    k = jnp.arange(F4, dtype=jnp.int32)[None, :] // F + 1
    neg_mask = jnp.where(t < S - k + 1, 0.0, -1e30).astype(jnp.float32)       # (S, 4F)

    out = pl.pallas_call(
        cnn_kernel,
        out_shape=jax.ShapeDtypeStruct((G, TB, out_pad), jnp.float32),
        grid=(G,),
        in_specs=[
            pl.BlockSpec((TB, S, E), lambda i: (i, 0, 0)),        # batch tile of bf16 acts
            pl.BlockSpec((4, E, F4), lambda i: (0, 0, 0)),        # resident stacked conv taps
            pl.BlockSpec((S, F4), lambda i: (0, 0)),              # resident tail mask
            pl.BlockSpec((1, F4), lambda i: (0, 0)),              # resident conv bias
            pl.BlockSpec((F4, out_pad), lambda i: (0, 0)),        # resident linear weight
            pl.BlockSpec((1, out_pad), lambda i: (0, 0)),         # resident linear bias
        ],
        out_specs=pl.BlockSpec((1, TB, out_pad), lambda i: (i, 0, 0)),
        compiler_params=pltpu.CompilerParams(
            dimension_semantics=("parallel",)),
        # TODO(synk): on v7x mark the resident weight/mask inputs pipeline_mode=pl.Buffered(1)
        # and set vmem_limit_bytes explicitly when raising _VMEM_BUDGET_BYTES; at production
        # embedding widths pad E to a multiple of 128 for lane-dense MXU K.
    )(embedded, packed["w_stack"], neg_mask, packed["b_cat"],
      packed["wl_pad"], packed["bl_pad"])

    return out.reshape(Bp, out_pad)[:B, :out_dim]


def reference_forward(text, params):
    """Pure-JAX f32 reference mirroring the PyTorch forward."""
    emb = jnp.take(params["embedding"], text, axis=0)          # (B, S, E)
    B, S, E = emb.shape
    feats = []
    for k in (1, 2, 3, 4):
        w = params[f"w{k}"]                                    # (k, E, F)
        b = params[f"b{k}"]                                    # (1, F)
        T = S - k + 1
        conv = jnp.zeros((B, T, w.shape[-1]), jnp.float32)
        for dt in range(k):
            conv = conv + jnp.einsum("bte,ef->btf", emb[:, dt:dt + T, :], w[dt])
        conv = jax.nn.relu(conv + b)
        feats.append(jnp.max(conv, axis=1))                    # (B, F)
    cat = jnp.concatenate(feats, axis=1)                       # (B, 4F)
    return cat @ params["wl"] + params["bl"]                   # (B, out_dim)


def init_params(key, vocab_size, embedding_dim, output_dim, n_filters, pad_idx):
    keys = jax.random.split(key, 11)
    params = {}
    emb = 0.1 * jax.random.normal(keys[0], (vocab_size, embedding_dim), jnp.float32)
    params["embedding"] = emb.at[pad_idx].set(0.0)             # padding_idx row is zero
    for i, k in enumerate((1, 2, 3, 4)):
        params[f"w{k}"] = 0.1 * jax.random.normal(
            keys[1 + 2 * i], (k, embedding_dim, n_filters), jnp.float32)
        params[f"b{k}"] = 0.1 * jax.random.normal(
            keys[2 + 2 * i], (1, n_filters), jnp.float32)
    params["wl"] = 0.1 * jax.random.normal(
        keys[9], (4 * n_filters, output_dim), jnp.float32)
    params["bl"] = 0.1 * jax.random.normal(keys[10], (1, output_dim), jnp.float32)
    return params


if __name__ == "__main__":
    vocab_size, embedding_dim, output_dim = 50, 32, 4
    n_filters, pad_idx = 8, 0

    root = jax.random.PRNGKey(0)
    k_params, k_text1, k_text2 = jax.random.split(root, 3)
    params = init_params(k_params, vocab_size, embedding_dim, output_dim,
                         n_filters, pad_idx)
    packed = prepare_params(params)            # one-time weight packing (bf16, lane-dense)

    # Small shapes required by the spec (batch=2, seq=16).  bf16 MXU inputs with f32
    # accumulation -> compare against the f32 reference with a looser tolerance.
    text = jax.random.randint(k_text1, (2, 16), 0, vocab_size, dtype=jnp.int32)
    out = jax.block_until_ready(cnn_forward(text, packed, out_dim=output_dim))
    ref = jax.block_until_ready(reference_forward(text, params))
    assert out.shape == (2, output_dim)
    assert jnp.allclose(out, ref, atol=3e-2, rtol=3e-2), "mismatch vs JAX reference (B=2)"

    # Larger batch exercises the folded batch-tile path (TB > 1, batch in the MXU M dim).
    text_big = jax.random.randint(k_text2, (16, 16), 0, vocab_size, dtype=jnp.int32)
    out_big = jax.block_until_ready(cnn_forward(text_big, packed, out_dim=output_dim))
    ref_big = jax.block_until_ready(reference_forward(text_big, params))
    assert out_big.shape == (16, output_dim)
    assert jnp.allclose(out_big, ref_big, atol=3e-2, rtol=3e-2), "mismatch vs JAX reference (B=16)"

    print("KERNEL_OK")
</pallas_src>

<mosaic_0001>
module attributes {stable_mosaic.version = 11 : i64} {
  func.func @cnn_kernel(%arg0: i32, %arg1: memref<1x16x32xbf16, #tpu.memory_space<vmem>>, %arg2: memref<4x32x32xbf16, #tpu.memory_space<vmem>>, %arg3: memref<16x32xf32, #tpu.memory_space<vmem>>, %arg4: memref<1x32xf32, #tpu.memory_space<vmem>>, %arg5: memref<32x128xbf16, #tpu.memory_space<vmem>>, %arg6: memref<1x128xf32, #tpu.memory_space<vmem>>, %arg7: memref<1x1x128xf32, #tpu.memory_space<vmem>>) attributes {dimension_semantics = [#tpu.dimension_semantics<parallel>], iteration_bounds = array<i64: 2>, scalar_prefetch = 0 : i64, scratch_operands = 0 : i64, tpu.core_type = #tpu.core_type<tc>, window_params = [{transform_indices = @transform_0, window_bounds = array<i64: 1, 16, 32>}, {pipeline_mode = #tpu.pipeline_mode<synchronous>, transform_indices = @transform_1, window_bounds = array<i64: 4, 32, 32>}, {pipeline_mode = #tpu.pipeline_mode<synchronous>, transform_indices = @transform_2, window_bounds = array<i64: 16, 32>}, {pipeline_mode = #tpu.pipeline_mode<synchronous>, transform_indices = @transform_3, window_bounds = array<i64: 1, 32>}, {pipeline_mode = #tpu.pipeline_mode<synchronous>, transform_indices = @transform_4, window_bounds = array<i64: 32, 128>}, {pipeline_mode = #tpu.pipeline_mode<synchronous>, transform_indices = @transform_5, window_bounds = array<i64: 1, 128>}, {transform_indices = @transform_6, window_bounds = array<i64: 1, 1, 128>}]} {
    %c0 = arith.constant 0 : index
    %c0_0 = arith.constant 0 : index
    %c0_1 = arith.constant 0 : index
    %0 = vector.load %arg1[%c0, %c0_0, %c0_1] : memref<1x16x32xbf16, #tpu.memory_space<vmem>>, vector<1x16x32xbf16>
    %1 = vector.shape_cast %0 : vector<1x16x32xbf16> to vector<16x32xbf16>
    %c0_2 = arith.constant 0 : index
    %c0_3 = arith.constant 0 : index
    %c0_4 = arith.constant 0 : index
    %2 = vector.load %arg2[%c0_2, %c0_3, %c0_4] : memref<4x32x32xbf16, #tpu.memory_space<vmem>>, vector<1x32x32xbf16>
    %3 = vector.shape_cast %2 : vector<1x32x32xbf16> to vector<32x32xbf16>
    %cst = arith.constant dense<0.000000e+00> : vector<16x32xf32>
    %4 = tpu.matmul %1, %3, %cst {dimension_numbers = #tpu.dot_dimension_numbers<[1], [0], [0], [1], [0, 0, 1, 1], [], []>} : vector<16x32xbf16>, vector<32x32xbf16>, vector<16x32xf32> -> vector<16x32xf32>
    %c1 = arith.constant 1 : index
    %c0_5 = arith.constant 0 : index
    %c0_6 = arith.constant 0 : index
    %5 = vector.load %arg2[%c1, %c0_5, %c0_6] : memref<4x32x32xbf16, #tpu.memory_space<vmem>>, vector<1x32x32xbf16>
    %6 = vector.shape_cast %5 : vector<1x32x32xbf16> to vector<32x32xbf16>
    %cst_7 = arith.constant dense<0.000000e+00> : vector<16x32xf32>
    %7 = tpu.matmul %1, %6, %cst_7 {dimension_numbers = #tpu.dot_dimension_numbers<[1], [0], [0], [1], [0, 0, 1, 1], [], []>} : vector<16x32xbf16>, vector<32x32xbf16>, vector<16x32xf32> -> vector<16x32xf32>
    %c15_i32 = arith.constant 15 : i32
    %8 = tpu.dynamic_rotate %7 by %c15_i32 dim 0 : vector<16x32xf32>, i32 -> vector<16x32xf32>
    %9 = arith.addf %4, %8 : vector<16x32xf32>
    %c2 = arith.constant 2 : index
    %c0_8 = arith.constant 0 : index
    %c0_9 = arith.constant 0 : index
    %10 = vector.load %arg2[%c2, %c0_8, %c0_9] : memref<4x32x32xbf16, #tpu.memory_space<vmem>>, vector<1x32x32xbf16>
    %11 = vector.shape_cast %10 : vector<1x32x32xbf16> to vector<32x32xbf16>
    %cst_10 = arith.constant dense<0.000000e+00> : vector<16x32xf32>
    %12 = tpu.matmul %1, %11, %cst_10 {dimension_numbers = #tpu.dot_dimension_numbers<[1], [0], [0], [1], [0, 0, 1, 1], [], []>} : vector<16x32xbf16>, vector<32x32xbf16>, vector<16x32xf32> -> vector<16x32xf32>
    %c14_i32 = arith.constant 14 : i32
    %13 = tpu.dynamic_rotate %12 by %c14_i32 dim 0 : vector<16x32xf32>, i32 -> vector<16x32xf32>
    %14 = arith.addf %9, %13 : vector<16x32xf32>
    %c3 = arith.constant 3 : index
    %c0_11 = arith.constant 0 : index
    %c0_12 = arith.constant 0 : index
    %15 = vector.load %arg2[%c3, %c0_11, %c0_12] : memref<4x32x32xbf16, #tpu.memory_space<vmem>>, vector<1x32x32xbf16>
    %16 = vector.shape_cast %15 : vector<1x32x32xbf16> to vector<32x32xbf16>
    %cst_13 = arith.constant dense<0.000000e+00> : vector<16x32xf32>
    %17 = tpu.matmul %1, %16, %cst_13 {dimension_numbers = #tpu.dot_dimension_numbers<[1], [0], [0], [1], [0, 0, 1, 1], [], []>} : vector<16x32xbf16>, vector<32x32xbf16>, vector<16x32xf32> -> vector<16x32xf32>
    %c13_i32 = arith.constant 13 : i32
    %18 = tpu.dynamic_rotate %17 by %c13_i32 dim 0 : vector<16x32xf32>, i32 -> vector<16x32xf32>
    %19 = arith.addf %14, %18 : vector<16x32xf32>
    %20 = vector.shape_cast %19 : vector<16x32xf32> to vector<1x16x32xf32>
    %c0_14 = arith.constant 0 : index
    %c0_15 = arith.constant 0 : index
    %21 = vector.load %arg3[%c0_14, %c0_15] : memref<16x32xf32, #tpu.memory_space<vmem>>, vector<16x32xf32>
    %22 = vector.shape_cast %21 : vector<16x32xf32> to vector<1x16x32xf32>
    %23 = arith.addf %20, %22 : vector<1x16x32xf32>
    %cst_16 = arith.constant dense<0xFF800000> : vector<1x32xf32>
    %24 = vector.multi_reduction <maximumf>, %23, %cst_16 [1] : vector<1x16x32xf32> to vector<1x32xf32>
    %c0_17 = arith.constant 0 : index
    %c0_18 = arith.constant 0 : index
    %25 = vector.load %arg4[%c0_17, %c0_18] : memref<1x32xf32, #tpu.memory_space<vmem>>, vector<1x32xf32>
    %26 = arith.addf %24, %25 : vector<1x32xf32>
    %cst_19 = arith.constant 0.000000e+00 : f32
    %27 = vector.broadcast %cst_19 : f32 to vector<1x32xf32>
    %28 = arith.maximumf %26, %27 : vector<1x32xf32>
    %29 = arith.truncf %28 : vector<1x32xf32> to vector<1x32xbf16>
    %c0_20 = arith.constant 0 : index
    %c0_21 = arith.constant 0 : index
    %30 = vector.load %arg5[%c0_20, %c0_21] : memref<32x128xbf16, #tpu.memory_space<vmem>>, vector<32x128xbf16>
    %cst_22 = arith.constant dense<0.000000e+00> : vector<1x128xf32>
    %31 = tpu.matmul %29, %30, %cst_22 {dimension_numbers = #tpu.dot_dimension_numbers<[1], [0], [0], [1], [0, 0, 1, 1], [], []>} : vector<1x32xbf16>, vector<32x128xbf16>, vector<1x128xf32> -> vector<1x128xf32>
    %c0_23 = arith.constant 0 : index
    %c0_24 = arith.constant 0 : index
    %32 = vector.load %arg6[%c0_23, %c0_24] : memref<1x128xf32, #tpu.memory_space<vmem>>, vector<1x128xf32>
    %33 = arith.addf %31, %32 : vector<1x128xf32>
    %c0_25 = arith.constant 0 : index
    %c0_26 = arith.constant 0 : index
    %c0_27 = arith.constant 0 : index
    %34 = vector.load %arg7[%c0_25, %c0_26, %c0_27] : memref<1x1x128xf32, #tpu.memory_space<vmem>>, vector<1x1x128xf32>
    %35 = vector.shape_cast %34 : vector<1x1x128xf32> to vector<1x128xf32>
    %36 = vector.shape_cast %33 : vector<1x128xf32> to vector<1x1x128xf32>
    tpu.vector_store %arg7[%c0_25, %c0_26, %c0_27], %36 {strides = array<i32>} : memref<1x1x128xf32, #tpu.memory_space<vmem>>, vector<1x1x128xf32>,
    return
  }
  func.func @transform_0(%arg0: i32) -> (i32, i32, i32) {
    %c0_i32 = arith.constant 0 : i32
    %c0_i32_0 = arith.constant 0 : i32
    %c0_i32_1 = arith.constant 0 : i32
    return %arg0, %c0_i32, %c0_i32_0 : i32, i32, i32
  }
  func.func @transform_1(%arg0: i32) -> (i32, i32, i32) {
    %c0_i32 = arith.constant 0 : i32
    %c0_i32_0 = arith.constant 0 : i32
    %c0_i32_1 = arith.constant 0 : i32
    %c0_i32_2 = arith.constant 0 : i32
    return %c0_i32, %c0_i32_0, %c0_i32_1 : i32, i32, i32
  }
  func.func @transform_2(%arg0: i32) -> (i32, i32) {
    %c0_i32 = arith.constant 0 : i32
    %c0_i32_0 = arith.constant 0 : i32
    %c0_i32_1 = arith.constant 0 : i32
    return %c0_i32, %c0_i32_0 : i32, i32
  }
  func.func @transform_3(%arg0: i32) -> (i32, i32) {
    %c0_i32 = arith.constant 0 : i32
    %c0_i32_0 = arith.constant 0 : i32
    %c0_i32_1 = arith.constant 0 : i32
    return %c0_i32, %c0_i32_0 : i32, i32
  }
  func.func @transform_4(%arg0: i32) -> (i32, i32) {
    %c0_i32 = arith.constant 0 : i32
    %c0_i32_0 = arith.constant 0 : i32
    %c0_i32_1 = arith.constant 0 : i32
    return %c0_i32, %c0_i32_0 : i32, i32
  }
  func.func @transform_5(%arg0: i32) -> (i32, i32) {
    %c0_i32 = arith.constant 0 : i32
    %c0_i32_0 = arith.constant 0 : i32
    %c0_i32_1 = arith.constant 0 : i32
    return %c0_i32, %c0_i32_0 : i32, i32
  }
  func.func @transform_6(%arg0: i32) -> (i32, i32, i32) {
    %c0_i32 = arith.constant 0 : i32
    %c0_i32_0 = arith.constant 0 : i32
    %c0_i32_1 = arith.constant 0 : i32
    return %arg0, %c0_i32, %c0_i32_0 : i32, i32, i32
  }
}

</mosaic_0001>

<llo_original>
// kernel: cnn_forward.1
$region0: #{cnn_forward.1}
  #allocation0 [shape = 'u32[]', space=smem, size = 0x4, offset = 0x4, fixed_abs, tag = 'smem constant byte address 0x4 - core index']
  #allocation1 [shape = 'u32[72,128]{1,0:T(1,128)}', space=vmem, size = 0x9000, scoped, tag = 'internal scratch']
  %s0 = inlined_call_operand.vmem [shape: bf16[2,16,32], index: 0, kind: input, shape index: {}]
  %s1 = inlined_call_operand.vmem [shape: bf16[4,32,32], index: 1, kind: input, shape index: {}]
  %s2 = inlined_call_operand.vmem [shape: f32[16,32], index: 2, kind: input, shape index: {}]
  %s3 = inlined_call_operand.vmem [shape: f32[1,32], index: 3, kind: input, shape index: {}]
  %s4 = inlined_call_operand.vmem [shape: bf16[32,128], index: 4, kind: input, shape index: {}]
  %s5 = inlined_call_operand.vmem [shape: f32[1,128], index: 5, kind: input, shape index: {}]
  %s6 = inlined_call_operand.hbm [shape: f32[2,1,128], index: 6, kind: output, shape index: {}]
  %s7 = sld [smem:[#allocation0]]
  $region57: #{cnn_forward.1} parent=0
    _
  %s9 = ssub.s32 1, %s7
  %s10 = scalar_select 0, %s9, %s7
  $region1: #{cnn_forward.1} parent=0
    #allocation2 [shape = 'u8[1024]{0}', space=vmem, size = 0x400, scoped, tag = 'output window, operand 0']
    #allocation3 [shape = 's32[2]{0}', space=sflag, size = 0x8, scoped, tag = 'scoped memory for cnn_forward.1']
    %11 = vsyncpa [#allocation3], 0
    %s12 = scalar_lea.sflag [#allocation3], 1
    %13 = vsyncpa %s12, 0
    loop: start=0, step=1, limit=4
    $region2: #{cnn_forward.1} parent=1 // loop_pre_header
      _
    $region3: #{cnn_forward.1} parent=1 // loop_header
      %s15 = sphi 0, %s19
      %p16 = scmp.ge.s32.totalorder %s15, 4
      %s25 = sphi 0, %s27
      %s28 = sphi 0, %s25
      %s29 = sphi 0, %s28
      %s45 = sphi 0, %s29
      %s49 = sphi 0, %s49
      %s51 = sphi 0, %s49
      %s52 = sphi 0, %s51
      %s66 = sphi 0, %s52
      %s70 = sphi 0, %s70
      %s72 = sphi 0, %s70
      %s73 = sphi 0, %s72
      %s87 = sphi 0, %s73
      %s91 = sphi 0, %s91
      %s93 = sphi 0, %s91
      %s94 = sphi 0, %s93
      %s108 = sphi 0, %s94
      %s112 = sphi 0, %s112
      %s114 = sphi 0, %s112
      %s115 = sphi 0, %s114
      %s129 = sphi 0, %s115
      %s133 = sphi 0, %s133
      %s135 = sphi 0, %s133
      %s136 = sphi 0, %s135
      %s150 = sphi 0, %s136
      %s156 = sphi 0, %s158
      %s159 = sphi 0, %s156
      %s160 = sphi 0, %s159
      %s176 = sphi 0, %s160
    $region4: #{cnn_forward.1} parent=1 // loop_header_branch
      %18 = sbr.rel (%p16) target = $region8
    $region5: #{cnn_forward.1} parent=1 // loop_body
      %s20 = ssub.s32 %s15, 1
      %s21 = ssub.s32 %s15, 2
      %s22 = sadd.s32 %s15, 1
      %s23 = ssub.s32 %s15, %s22
      %p24 = scmp.eq.s32.totalorder %s23, 0
      %s26 = sadd.s32 %s25, 1
      %s27 = scalar_select %p24, %s25, %s26
      %p30 = pneg %p24
      %p31 = scmp.eq.s32.totalorder %s15, 1
      %p32 = por %p30, %p31
      %p33 = scmp.ne.s32.totalorder %s25, %s28
      %p34 = scmp.eq.s32.totalorder %s15, 0
      %p35 = por %p33, %p34
      %p36 = scmp.ne.s32.totalorder %s25, %s28
      %p37 = scmp.eq.s32.totalorder %s20, 1
      %p38 = por %p36, %p37
      %p39 = scmp.ne.s32.totalorder %s28, %s29
      %p40 = scmp.eq.s32.totalorder %s20, 0
      %p41 = por %p39, %p40
      %p42 = scmp.ne.s32.totalorder %s28, %s29
      %p43 = scmp.eq.s32.totalorder %s21, 1
      %p44 = por %p42, %p43
      %p46 = scmp.ne.s32.totalorder %s29, %s45
      %p47 = scmp.eq.s32.totalorder %s21, 0
      %p48 = por %p46, %p47
      %s50 = sadd.s32 %s49, 1
      %p53 = scmp.eq.s32.totalorder %s15, 1
      %p54 = scmp.ne.s32.totalorder %s49, %s51
      %p55 = scmp.eq.s32.totalorder %s15, 0
      %p56 = por %p54, %p55
      %p57 = scmp.ne.s32.totalorder %s49, %s51
      %p58 = scmp.eq.s32.totalorder %s20, 1
      %p59 = por %p57, %p58
      %p60 = scmp.ne.s32.totalorder %s51, %s52
      %p61 = scmp.eq.s32.totalorder %s20, 0
      %p62 = por %p60, %p61
      %p63 = scmp.ne.s32.totalorder %s51, %s52
      %p64 = scmp.eq.s32.totalorder %s21, 1
      %p65 = por %p63, %p64
      %p67 = scmp.ne.s32.totalorder %s52, %s66
      %p68 = scmp.eq.s32.totalorder %s21, 0
      %p69 = por %p67, %p68
      %s71 = sadd.s32 %s70, 1
      %p74 = scmp.eq.s32.totalorder %s15, 1
      %p75 = scmp.ne.s32.totalorder %s70, %s72
      %p76 = scmp.eq.s32.totalorder %s15, 0
      %p77 = por %p75, %p76
      %p78 = scmp.ne.s32.totalorder %s70, %s72
      %p79 = scmp.eq.s32.totalorder %s20, 1
      %p80 = por %p78, %p79
      %p81 = scmp.ne.s32.totalorder %s72, %s73
      %p82 = scmp.eq.s32.totalorder %s20, 0
      %p83 = por %p81, %p82
      %p84 = scmp.ne.s32.totalorder %s72, %s73
      %p85 = scmp.eq.s32.totalorder %s21, 1
      %p86 = por %p84, %p85
      %p88 = scmp.ne.s32.totalorder %s73, %s87
      %p89 = scmp.eq.s32.totalorder %s21, 0
      %p90 = por %p88, %p89
      %s92 = sadd.s32 %s91, 1
      %p95 = scmp.eq.s32.totalorder %s15, 1
      %p96 = scmp.ne.s32.totalorder %s91, %s93
      %p97 = scmp.eq.s32.totalorder %s15, 0
      %p98 = por %p96, %p97
      %p99 = scmp.ne.s32.totalorder %s91, %s93
      %p100 = scmp.eq.s32.totalorder %s20, 1
      %p101 = por %p99, %p100
      %p102 = scmp.ne.s32.totalorder %s93, %s94
      %p103 = scmp.eq.s32.totalorder %s20, 0
      %p104 = por %p102, %p103
      %p105 = scmp.ne.s32.totalorder %s93, %s94
      %p106 = scmp.eq.s32.totalorder %s21, 1
      %p107 = por %p105, %p106
      %p109 = scmp.ne.s32.totalorder %s94, %s108
      %p110 = scmp.eq.s32.totalorder %s21, 0
      %p111 = por %p109, %p110
      %s113 = sadd.s32 %s112, 1
      %p116 = scmp.eq.s32.totalorder %s15, 1
      %p117 = scmp.ne.s32.totalorder %s112, %s114
      %p118 = scmp.eq.s32.totalorder %s15, 0
      %p119 = por %p117, %p118
      %p120 = scmp.ne.s32.totalorder %s112, %s114
      %p121 = scmp.eq.s32.totalorder %s20, 1
      %p122 = por %p120, %p121
      %p123 = scmp.ne.s32.totalorder %s114, %s115
      %p124 = scmp.eq.s32.totalorder %s20, 0
      %p125 = por %p123, %p124
      %p126 = scmp.ne.s32.totalorder %s114, %s115
      %p127 = scmp.eq.s32.totalorder %s21, 1
      %p128 = por %p126, %p127
      %p130 = scmp.ne.s32.totalorder %s115, %s129
      %p131 = scmp.eq.s32.totalorder %s21, 0
      %p132 = por %p130, %p131
      %s134 = sadd.s32 %s133, 1
      %p137 = scmp.eq.s32.totalorder %s15, 1
      %p138 = scmp.ne.s32.totalorder %s133, %s135
      %p139 = scmp.eq.s32.totalorder %s15, 0
      %p140 = por %p138, %p139
      %p141 = scmp.ne.s32.totalorder %s133, %s135
      %p142 = scmp.eq.s32.totalorder %s20, 1
      %p143 = por %p141, %p142
      %p144 = scmp.ne.s32.totalorder %s135, %s136
      %p145 = scmp.eq.s32.totalorder %s20, 0
      %p146 = por %p144, %p145
      %p147 = scmp.ne.s32.totalorder %s135, %s136
      %p148 = scmp.eq.s32.totalorder %s21, 1
      %p149 = por %p147, %p148
      %p151 = scmp.ne.s32.totalorder %s136, %s150
      %p152 = scmp.eq.s32.totalorder %s21, 0
      %p153 = por %p151, %p152
      %s154 = ssub.s32 %s15, %s22
      %p155 = scmp.eq.s32.totalorder %s154, 0
      %s157 = sadd.s32 %s156, 1
      %s158 = scalar_select %p155, %s156, %s157
      %p161 = pneg %p155
      %p162 = scmp.eq.s32.totalorder %s15, 1
      %p163 = por %p161, %p162
      %p164 = scmp.ne.s32.totalorder %s156, %s159
      %p165 = scmp.eq.s32.totalorder %s15, 0
      %p166 = por %p164, %p165
      %p167 = scmp.ne.s32.totalorder %s156, %s159
      %p168 = scmp.eq.s32.totalorder %s20, 1
      %p169 = por %p167, %p168
      %p170 = scmp.ne.s32.totalorder %s159, %s160
      %p171 = scmp.eq.s32.totalorder %s20, 0
      %p172 = por %p170, %p171
      %p173 = scmp.ne.s32.totalorder %s159, %s160
      %p174 = scmp.eq.s32.totalorder %s21, 1
      %p175 = por %p173, %p174
      %p177 = scmp.ne.s32.totalorder %s160, %s176
      %p178 = scmp.eq.s32.totalorder %s21, 0
      %p179 = por %p177, %p178
      %p180 = scmp.le.s32.totalorder 1, %s15
      %p181 = scmp.lt.s32.totalorder %s15, 3
      %p182 = pnand %p180, %p181
      %p183 = pneg %p182
      // Predicated region
      $region9: #{cnn_forward.1} parent=5 // pred_check
        _
      $region10: #{cnn_forward.1} parent=5 // pred_check_branch
        %185 = sbr.rel (%p182) target = $region12
      $region11: #{cnn_forward.1} parent=5 // pred_region
        %s186 = ssub.s32 %s15, 1
        // Predicated region
        $region13: #{cnn_forward.1} parent=11 // pred_check
          %p187 = pneg %p62
        $region14: #{cnn_forward.1} parent=11 // pred_check_branch
          %189 = sbr.rel (%p187) target = $region16
        $region15: #{cnn_forward.1} parent=11 // pred_region
          _
        $region16: #{cnn_forward.1} parent=11 // pred_fallthru
          _
        // Predicated region
        $region17: #{cnn_forward.1} parent=11 // pred_check
          %p190 = pneg %p83
        $region18: #{cnn_forward.1} parent=11 // pred_check_branch
          %192 = sbr.rel (%p190) target = $region20
        $region19: #{cnn_forward.1} parent=11 // pred_region
          _
        $region20: #{cnn_forward.1} parent=11 // pred_fallthru
          _
        // Predicated region
        $region21: #{cnn_forward.1} parent=11 // pred_check
          %p193 = pneg %p104
        $region22: #{cnn_forward.1} parent=11 // pred_check_branch
          %195 = sbr.rel (%p193) target = $region24
        $region23: #{cnn_forward.1} parent=11 // pred_region
          _
        $region24: #{cnn_forward.1} parent=11 // pred_fallthru
          _
        // Predicated region
        $region25: #{cnn_forward.1} parent=11 // pred_check
          %p196 = pneg %p125
        $region26: #{cnn_forward.1} parent=11 // pred_check_branch
          %198 = sbr.rel (%p196) target = $region28
        $region27: #{cnn_forward.1} parent=11 // pred_region
          _
        $region28: #{cnn_forward.1} parent=11 // pred_fallthru
          _
        // Predicated region
        $region29: #{cnn_forward.1} parent=11 // pred_check
          %p199 = pneg %p146
        $region30: #{cnn_forward.1} parent=11 // pred_check_branch
          %201 = sbr.rel (%p199) target = $region32
        $region31: #{cnn_forward.1} parent=11 // pred_region
          _
        $region32: #{cnn_forward.1} parent=11 // pred_fallthru
          _
      $region12: #{cnn_forward.1} parent=5 // pred_fallthru
        _
      %p202 = scmp.lt.s32.totalorder %s15, 2
      // Predicated region
      $region33: #{cnn_forward.1} parent=5 // pred_check
        %p203 = pneg %p202
      $region34: #{cnn_forward.1} parent=5 // pred_check_branch
        %205 = sbr.rel (%p203) target = $region36
      $region35: #{cnn_forward.1} parent=5 // pred_region
        // Predicated region
        $region37: #{cnn_forward.1} parent=35 // pred_check
          %p206 = pneg %p35
        $region38: #{cnn_forward.1} parent=35 // pred_check_branch
          %208 = sbr.rel (%p206) target = $region40
        $region39: #{cnn_forward.1} parent=35 // pred_region
          %p209 = scmp.lt.s32.totalorder %s15, 1
          %s210 = scalar_select %p209, %s15, 1
          %s211 = smul.addr %s210, 2
          %s212 = smul.addr %s211, 4
          %s213 = scalar_lea.vmem %s0, %s212
        $region40: #{cnn_forward.1} parent=35 // pred_fallthru
          _
      $region36: #{cnn_forward.1} parent=5 // pred_fallthru
        _
      %p214 = scmp.le.s32.totalorder 1, %s15
      %p215 = scmp.lt.s32.totalorder %s15, 3
      %p216 = pnand %p214, %p215
      %p217 = pneg %p216
      // Predicated region
      $region41: #{cnn_forward.1} parent=5 // pred_check
        _
      $region42: #{cnn_forward.1} parent=5 // pred_check_branch
        %219 = sbr.rel (%p216) target = $region44
      $region43: #{cnn_forward.1} parent=5 // pred_region
        %s220 = ssub.s32 %s15, 1
        %p221 = scmp.lt.s32.totalorder %s20, 1
        %s222 = scalar_select %p221, %s20, 1
        %s223 = smul.addr %s222, 2
        %s224 = smul.addr %s223, 4
        %s225 = scalar_lea.vmem %s0, %s224
        %p226 = pneg %p41
        %p227 = pneg %p38
        %p228 = pneg %p62
        %p229 = pneg %p59
        %p230 = pneg %p83
        %p231 = pneg %p80
        %p232 = pneg %p104
        %p233 = pneg %p101
        %p234 = pneg %p125
        %p235 = pneg %p122
        %p236 = pneg %p146
        %p237 = pneg %p143
        %p238 = pneg %p172
        %p239 = pneg %p169
        %s240 = sand.u32 %s159, 1
        %s241 = scalar_lea.sflag [#allocation3], %s240
        %s242 = sand.u32 %s159, 1
        %s243 = scalar_lea.vmem [#allocation2], %s242
        %p244 = scmp.lt.s32.totalorder %s20, 1
        %s245 = scalar_select %p244, %s20, 1
        %s246 = smul.addr %s245, 2
        %s247 = smul.addr %s246, 4
        %s248 = scalar_lea.vmem %s0, %s247
        %v250 = vld [vmem:[%s248] sm:$0xf]
        %v251 = vld [vmem:[%s248 + $0x4] sm:$0xf]
        %v252 = vld [vmem:[%s1] sm:$0xf]
        %v253 = vld [vmem:[%s1 + $0x4] sm:$0xf]
        %v254 = vld [vmem:[%s1 + $0x8] sm:$0xf]
        %v255 = vld [vmem:[%s1 + $0xc] sm:$0xf]
        %s256 = scalar_lea.vmem %s1, 16
        %v257 = vld [vmem:[%s256] sm:$0xf]
        %v258 = vld [vmem:[%s256 + $0x4] sm:$0xf]
        %v259 = vld [vmem:[%s256 + $0x8] sm:$0xf]
        %v260 = vld [vmem:[%s256 + $0xc] sm:$0xf]
        %v263 = vunpack.c.l.b16 %v250
        %v264 = vunpack.c.l.b16 %v251
        %v265 = vpack.c.b16 %v264, %v263
        %v270 = vunpack.c.l.b16 %v257
        %v271 = vunpack.c.l.b16 %v258
        %v272 = vunpack.c.l.b16 %v259
        %v273 = vunpack.c.l.b16 %v260
        %v274 = vpack.c.b16 %v271, %v270
        %v275 = vpack.c.b16 %v273, %v272
        %vm278 = vcmask 261120
        %v280 = vsel %vm278, %v265, 0
        %282 = vmatpush.bf16.msra.mxu0 0
        %283 = vmatpush.bf16.msra.mxu0 0
        %284 = vmatpush.bf16.msra.mxu0 0
        %285 = vmatpush.bf16.msra.mxu0 0
        %286 = vmatpush.bf16.msra.mxu0 0
        %287 = vmatpush.bf16.msra.mxu0 0
        %288 = vmatpush.bf16.msra.mxu0 %v275
        %289 = vmatpush.bf16.msra.mxu0 %v274
        %290 = vmatmul.bf16.gmra.mxu0 %v280
        %v291 = vpop.f32.mrf.mxu0
        %v292 = vadd.f32 0.0, %v291
        %v293 = vpop.f32.mrf.mxu0
        %v294 = vadd.f32 0.0, %v293
        %295 = vdwg.mxu0
        %v296 = vrot.slane %v292, 1
        %v297 = vrot.slane %v294, 1
        %v298 = vlaneseq
        %v299 = vshrl.u32 %v298, 7
        %vm300 = vcmp.lt.s32.totalorder %v299, 7
        %v301 = vsel %vm300, %v296, %v297
        %v302 = vsel %vm300, %v297, %v296
        %v307 = vunpack.c.l.b16 %v252
        %v308 = vunpack.c.l.b16 %v253
        %v309 = vunpack.c.l.b16 %v254
        %v310 = vunpack.c.l.b16 %v255
        %v311 = vpack.c.b16 %v308, %v307
        %v312 = vpack.c.b16 %v310, %v309
        %315 = vmatpush.bf16.msra.mxu0 0
        %316 = vmatpush.bf16.msra.mxu0 0
        %317 = vmatpush.bf16.msra.mxu0 0
        %318 = vmatpush.bf16.msra.mxu0 0
        %319 = vmatpush.bf16.msra.mxu0 0
        %320 = vmatpush.bf16.msra.mxu0 0
        %321 = vmatpush.bf16.msra.mxu0 %v312
        %322 = vmatpush.bf16.msra.mxu0 %v311
        %323 = vmatmul.bf16.gmra.mxu0 %v280
        %v324 = vpop.f32.mrf.mxu0
        %v325 = vadd.f32 %v301, %v324
        %v326 = vpop.f32.mrf.mxu0
        %v327 = vadd.f32 %v302, %v326
        %328 = vdwg.mxu0
        %s329 = scalar_lea.vmem %s1, 32
        %v330 = vld [vmem:[%s329] sm:$0xf]
        %v331 = vld [vmem:[%s329 + $0x4] sm:$0xf]
        %v332 = vld [vmem:[%s329 + $0x8] sm:$0xf]
        %v333 = vld [vmem:[%s329 + $0xc] sm:$0xf]
        %v338 = vunpack.c.l.b16 %v330
        %v339 = vunpack.c.l.b16 %v331
        %v340 = vunpack.c.l.b16 %v332
        %v341 = vunpack.c.l.b16 %v333
        %v342 = vpack.c.b16 %v339, %v338
        %v343 = vpack.c.b16 %v341, %v340
        %346 = vmatpush.bf16.msra.mxu0 0
        %347 = vmatpush.bf16.msra.mxu0 0
        %348 = vmatpush.bf16.msra.mxu0 0
        %349 = vmatpush.bf16.msra.mxu0 0
        %350 = vmatpush.bf16.msra.mxu0 0
        %351 = vmatpush.bf16.msra.mxu0 0
        %352 = vmatpush.bf16.msra.mxu0 %v343
        %353 = vmatpush.bf16.msra.mxu0 %v342
        %354 = vmatmul.bf16.gmra.mxu0 %v280
        %v355 = vpop.f32.mrf.mxu0
        %v356 = vadd.f32 0.0, %v355
        %v357 = vpop.f32.mrf.mxu0
        %v358 = vadd.f32 0.0, %v357
        %359 = vdwg.mxu0
        %v360 = vrot.slane %v356, 2
        %v361 = vrot.slane %v358, 2
        %vm362 = vcmp.lt.s32.totalorder %v299, 6
        %v363 = vsel %vm362, %v360, %v361
        %v364 = vsel %vm362, %v361, %v360
        %v365 = vadd.f32 %v325, %v363
        %v366 = vadd.f32 %v327, %v364
        %s367 = scalar_lea.vmem %s1, 48
        %v368 = vld [vmem:[%s367] sm:$0xf]
        %v369 = vld [vmem:[%s367 + $0x4] sm:$0xf]
        %v370 = vld [vmem:[%s367 + $0x8] sm:$0xf]
        %v371 = vld [vmem:[%s367 + $0xc] sm:$0xf]
        %v376 = vunpack.c.l.b16 %v368
        %v377 = vunpack.c.l.b16 %v369
        %v378 = vunpack.c.l.b16 %v370
        %v379 = vunpack.c.l.b16 %v371
        %v380 = vpack.c.b16 %v377, %v376
        %v381 = vpack.c.b16 %v379, %v378
        %384 = vmatpush.bf16.msra.mxu0 0
        %385 = vmatpush.bf16.msra.mxu0 0
        %386 = vmatpush.bf16.msra.mxu0 0
        %387 = vmatpush.bf16.msra.mxu0 0
        %388 = vmatpush.bf16.msra.mxu0 0
        %389 = vmatpush.bf16.msra.mxu0 0
        %390 = vmatpush.bf16.msra.mxu0 %v381
        %391 = vmatpush.bf16.msra.mxu0 %v380
        %392 = vmatmul.bf16.gmra.mxu0 %v280
        %v393 = vpop.f32.mrf.mxu0
        %v394 = vadd.f32 0.0, %v393
        %v395 = vpop.f32.mrf.mxu0
        %v396 = vadd.f32 0.0, %v395
        %397 = vdwg.mxu0
        %v398 = vrot.slane %v394, 3
        %v399 = vrot.slane %v396, 3
        %vm400 = vcmp.lt.s32.totalorder %v299, 5
        %v401 = vsel %vm400, %v398, %v399
        %v402 = vsel %vm400, %v399, %v398
        %v403 = vadd.f32 %v365, %v401
        %v404 = vadd.f32 %v366, %v402
        %v405 = vld [vmem:[%s2] sm:$0xff]
        %v406 = vld [vmem:[%s2 + $0x8] sm:$0xff]
        %v407 = vadd.f32 %v403, %v405
        %v408 = vadd.f32 %v404, %v406
        %v409 = vsel %vm278, %v407, -inf
        %v410 = vsel %vm278, %v408, -inf
        %v411 = vmax.f32 %v409, %v410
        %v412 = vrot.slane %v411, 4
        %v413 = vmax.f32 %v411, %v412
        %v414 = vrot.slane %v413, 2
        %v415 = vmax.f32 %v413, %v414
        %v416 = vrot.slane %v415, 1
        %v417 = vmax.f32 %v415, %v416
        %v418 = vld [vmem:[%s3] sm:$0x1]
        %v419 = vadd.f32 %v417, %v418
        %v420 = vmax.f32 %v419, 0.0
        %v421 = vpack.c.bf16 %v420, %v420
        %v422 = vld [vmem:[%s4] sm:$0xf]
        %v423 = vld [vmem:[%s4 + $0x4] sm:$0xf]
        %v424 = vld [vmem:[%s4 + $0x8] sm:$0xf]
        %v425 = vld [vmem:[%s4 + $0xc] sm:$0xf]
        %v426 = vld [vmem:[%s5] sm:$0x1]
        %v431 = vunpack.c.l.b16 %v422
        %v432 = vunpack.c.l.b16 %v423
        %v433 = vunpack.c.l.b16 %v424
        %v434 = vunpack.c.l.b16 %v425
        %v435 = vpack.c.b16 %v432, %v431
        %v436 = vpack.c.b16 %v434, %v433
        %v440 = vsel %vm278, %v421, 0
        %442 = vmatpush.bf16.msra.mxu0 0
        %443 = vmatpush.bf16.msra.mxu0 0
        %444 = vmatpush.bf16.msra.mxu0 0
        %445 = vmatpush.bf16.msra.mxu0 0
        %446 = vmatpush.bf16.msra.mxu0 0
        %447 = vmatpush.bf16.msra.mxu0 0
        %448 = vmatpush.bf16.msra.mxu0 %v436
        %449 = vmatpush.bf16.msra.mxu0 %v435
        %450 = vmatmul.bf16.gmra.mxu0 %v440
        %v451 = vpop.f32.mrf.mxu0
        %v452 = vadd.f32 %v426, %v451
        %v453 = vpop.f32.mrf.mxu0
        %454 = vdwg.mxu0
        %455 = vst [vmem:[%s243] sm:$0x1] %v452
        %s456 = sand.u32 %s159, 1
        %s457 = scalar_lea.sflag [#allocation3], %s456
        %s458 = sand.u32 %s159, 1
        %s459 = scalar_lea.vmem [#allocation2], %s458
        // Predicated region
        $region45: #{cnn_forward.1} parent=43 // pred_check
          %p460 = pneg %p169
        $region46: #{cnn_forward.1} parent=43 // pred_check_branch
          %462 = sbr.rel (%p460) target = $region48
        $region47: #{cnn_forward.1} parent=43 // pred_region
          %464 = vsyncadd %s457, 0
          %s465 = scalar_lea.hbm %s6, %s20
          %s467 = sshll.u32 %s459, 4
          %s468 = int_to_ptr.vmem [resolvable:$true] %s467
          %s469 = sshll.u32 %s465, 4
          %s470 = int_to_ptr.hbm [resolvable:$true] %s469
          %472 = dma.vmem_to_hbm [thread:$0]  %s468, 16, %s470, %s457
        $region48: #{cnn_forward.1} parent=43 // pred_fallthru
          _
      $region44: #{cnn_forward.1} parent=5 // pred_fallthru
        _
      %p473 = scmp.le.s32.totalorder 2, %s15
      // Predicated region
      $region49: #{cnn_forward.1} parent=5 // pred_check
        %p474 = pneg %p473
      $region50: #{cnn_forward.1} parent=5 // pred_check_branch
        %476 = sbr.rel (%p474) target = $region52
      $region51: #{cnn_forward.1} parent=5 // pred_region
        %s477 = ssub.s32 %s15, 2
        // Predicated region
        $region53: #{cnn_forward.1} parent=51 // pred_check
          %p478 = pneg %p175
        $region54: #{cnn_forward.1} parent=51 // pred_check_branch
          %480 = sbr.rel (%p478) target = $region56
        $region55: #{cnn_forward.1} parent=51 // pred_region
          %s481 = sand.u32 %s160, 1
          %s482 = scalar_lea.sflag [#allocation3], %s481
          %s483 = sand.u32 %s160, 1
          %s484 = scalar_lea.vmem [#allocation2], %s483
          %486 = dma.done %s482, 16
        $region56: #{cnn_forward.1} parent=51 // pred_fallthru
          _
      $region52: #{cnn_forward.1} parent=5 // pred_fallthru
        _
    $region6: #{cnn_forward.1} parent=1 // loop_footer
      %s19 = sadd.s32 1, %s15
    $region7: #{cnn_forward.1} parent=1 // loop_footer_branch
      %14 = sbr.rel target = $region3
    $region8: #{cnn_forward.1} parent=1 // loop_exit
      _
    %487 = vsyncpa [#allocation3], 1
    %s488 = scalar_lea.sflag [#allocation3], 1
    %489 = vsyncpa %s488, 1

</llo_original>
